<compile_context>
chip_gen: v7x
topology: tpu7x:2x2x1
jax: 0.10.0
libtpu: 0.0.40
codegen_flags: <defaults>
</compile_context>

<pallas_src>
import functools
import numpy as np
import jax
import jax.numpy as jnp
from jax import lax
from jax.experimental import pallas as pl
from jax.experimental.pallas import tpu as pltpu

EPS_BN = 1e-5
MATMUL_DTYPE = jnp.bfloat16     # MXU operand dtype; accumulation is always f32


# --------------------------------------------------------------------------- #
# helpers                                                                     #
# --------------------------------------------------------------------------- #
def _round_up(x, m):
    return ((x + m - 1) // m) * m


def _tile(dim, cap):
    """Largest power-of-two tile <= cap that divides dim (dim is a multiple of 8)."""
    if dim <= cap:
        return dim
    t = cap
    while dim % t:
        t //= 2
    return t


# --------------------------------------------------------------------------- #
# Kernel 1: generic tiled matmul + bias (+ optional ReLU), f32 accumulator    #
# Used for: encoder Linear(F,E), LSTM gate projections x @ W_ih + b.          #
# --------------------------------------------------------------------------- #
def _matmul_bias_kernel(x_ref, w_ref, b_ref, o_ref, acc_ref, *, activation):
    @pl.when(pl.program_id(2) == 0)
    def _():
        acc_ref[...] = jnp.zeros_like(acc_ref)

    acc_ref[...] += jnp.dot(x_ref[...], w_ref[...],
                            preferred_element_type=jnp.float32)

    @pl.when(pl.program_id(2) == pl.num_programs(2) - 1)
    def _():
        y = acc_ref[...] + b_ref[...]
        if activation == "relu":
            y = jnp.maximum(y, 0.0)
        o_ref[...] = y.astype(o_ref.dtype)


def matmul_bias(x, w, b, *, activation=None, tm_cap=256, tn_cap=256, tk_cap=512):
    M, K = x.shape
    K2, N = w.shape
    assert K == K2 and b.shape == (1, N)
    tm, tn, tk = _tile(M, tm_cap), _tile(N, tn_cap), _tile(K, tk_cap)
    return pl.pallas_call(
        functools.partial(_matmul_bias_kernel, activation=activation),
        grid=(M // tm, N // tn, K // tk),
        in_specs=[
            pl.BlockSpec((tm, tk), lambda i, j, k: (i, k)),
            pl.BlockSpec((tk, tn), lambda i, j, k: (k, j)),
            pl.BlockSpec((1, tn), lambda i, j, k: (0, j)),
        ],
        out_specs=pl.BlockSpec((tm, tn), lambda i, j, k: (i, j)),
        out_shape=jax.ShapeDtypeStruct((M, N), jnp.float32),
        scratch_shapes=[pltpu.VMEM((tm, tn), jnp.float32)],
        compiler_params=pltpu.CompilerParams(
            dimension_semantics=("parallel", "parallel", "arbitrary")),
    )(x.astype(MATMUL_DTYPE), w.astype(MATMUL_DTYPE), b)


# --------------------------------------------------------------------------- #
# Kernel 2: BatchNorm1d (training-mode batch statistics) on padded rows       #
# Batch padding rows are excluded from the statistics via a row mask.         #
# --------------------------------------------------------------------------- #
def _batchnorm_kernel(y_ref, gamma_ref, beta_ref, o_ref, *, n_valid):
    y = y_ref[...]
    rows = lax.broadcasted_iota(jnp.int32, y.shape, 0)
    mask = (rows < n_valid).astype(jnp.float32)
    inv_n = 1.0 / float(n_valid)
    mean = jnp.sum(y * mask, axis=0, keepdims=True) * inv_n
    diff = (y - mean) * mask
    var = jnp.sum(diff * diff, axis=0, keepdims=True) * inv_n
    yn = diff * lax.rsqrt(var + EPS_BN)
    o_ref[...] = (yn * gamma_ref[...] + beta_ref[...]) * mask
    # TODO(synk): Dropout(0.5) after BN is stochastic in train mode; treated as identity (eval).
    # TODO(synk): running_mean/running_var buffer updates are not emitted (forward math only).


def batchnorm_forward(y, gamma, beta, n_valid):
    Bp, Ep = y.shape
    return pl.pallas_call(
        functools.partial(_batchnorm_kernel, n_valid=n_valid),
        out_shape=jax.ShapeDtypeStruct((Bp, Ep), jnp.float32),
    )(y, gamma, beta)


# --------------------------------------------------------------------------- #
# Kernel 3: single-layer LSTM recurrence with hoisted input projection.       #
# gates_x = x @ W_ih + (b_ih + b_hh) is precomputed; the in-kernel time loop  #
# only does h @ W_hh (bf16 MXU) + gate nonlinearities (f32).                  #
# Grid is over batch tiles ("parallel") so v7x can split across TensorCores.  #
# --------------------------------------------------------------------------- #
def _lstm_layer_kernel(gx_ref, whh_ref, hseq_ref, h_sc, c_sc, *, hidden):
    T1 = gx_ref.shape[0]
    H = hidden
    whh = whh_ref[...]                         # (Hp, 4Hp) bf16, loaded once

    h_sc[...] = jnp.zeros_like(h_sc)
    c_sc[...] = jnp.zeros_like(c_sc)

    @pl.loop(0, T1)
    def _(t):
        g = gx_ref[t] + jnp.dot(h_sc[...].astype(whh.dtype), whh,
                                preferred_element_type=jnp.float32)
        # PyTorch LSTM gate ordering: i, f, g, o (lane-aligned slices, H is 128-multiple)
        i = jax.nn.sigmoid(g[:, 0 * H:1 * H])
        f = jax.nn.sigmoid(g[:, 1 * H:2 * H])
        gg = jnp.tanh(g[:, 2 * H:3 * H])
        o = jax.nn.sigmoid(g[:, 3 * H:4 * H])
        c = f * c_sc[...] + i * gg
        h = o * jnp.tanh(c)
        c_sc[...] = c
        h_sc[...] = h
        hseq_ref[t] = h


def lstm_layer_forward(gates_x, whh, *, hidden):
    T1, Bp, G = gates_x.shape
    Hp = hidden
    assert G == 4 * Hp
    bt = _tile(Bp, 64)                         # batch tile for the "parallel" grid axis
    return pl.pallas_call(
        functools.partial(_lstm_layer_kernel, hidden=Hp),
        grid=(Bp // bt,),
        in_specs=[
            pl.BlockSpec((T1, bt, 4 * Hp), lambda b: (0, b, 0)),
            pl.BlockSpec((Hp, 4 * Hp), lambda b: (0, 0)),
        ],
        out_specs=pl.BlockSpec((T1, bt, Hp), lambda b: (0, b, 0)),
        out_shape=jax.ShapeDtypeStruct((T1, Bp, Hp), jnp.float32),
        scratch_shapes=[pltpu.VMEM((bt, Hp), jnp.float32),
                        pltpu.VMEM((bt, Hp), jnp.float32)],
        compiler_params=pltpu.CompilerParams(dimension_semantics=("parallel",)),
    )(gates_x, whh.astype(MATMUL_DTYPE))


# --------------------------------------------------------------------------- #
# Kernel 4: output head Linear(H,H) -> ReLU -> Linear(H, V+2), tiled over     #
# (packed rows, vocab). The ReLU hidden is computed once per row tile (j==0)  #
# and held in VMEM scratch; W2 is streamed one (H, tn) column tile at a time. #
# --------------------------------------------------------------------------- #
def _out_mlp_kernel(h_ref, w1_ref, b1_ref, w2_ref, b2_ref, o_ref, y_ref):
    @pl.when(pl.program_id(1) == 0)
    def _():
        y = jnp.dot(h_ref[...], w1_ref[...],
                    preferred_element_type=jnp.float32) + b1_ref[...]
        y_ref[...] = jnp.maximum(y, 0.0)

    o_ref[...] = (jnp.dot(y_ref[...].astype(MATMUL_DTYPE), w2_ref[...],
                          preferred_element_type=jnp.float32) + b2_ref[...])


def out_mlp_forward(h, w1, b1, w2, b2):
    Np, Hp = h.shape
    _, V2p = w2.shape
    tm = _tile(Np, 128)
    tn = _tile(V2p, 256)
    return pl.pallas_call(
        _out_mlp_kernel,
        grid=(Np // tm, V2p // tn),
        in_specs=[
            pl.BlockSpec((tm, Hp), lambda i, j: (i, 0)),
            pl.BlockSpec((Hp, Hp), lambda i, j: (0, 0)),
            pl.BlockSpec((1, Hp), lambda i, j: (0, 0)),
            pl.BlockSpec((Hp, tn), lambda i, j: (0, j)),
            pl.BlockSpec((1, tn), lambda i, j: (0, j)),
        ],
        out_specs=pl.BlockSpec((tm, tn), lambda i, j: (i, j)),
        out_shape=jax.ShapeDtypeStruct((Np, V2p), jnp.float32),
        scratch_shapes=[pltpu.VMEM((tm, Hp), jnp.float32)],
        compiler_params=pltpu.CompilerParams(
            dimension_semantics=("parallel", "arbitrary")),
    )(h.astype(MATMUL_DTYPE), w1.astype(MATMUL_DTYPE), b1,
      w2.astype(MATMUL_DTYPE), b2)


# --------------------------------------------------------------------------- #
# pack_padded_sequence bookkeeping (host-side glue, lengths are static)       #
# --------------------------------------------------------------------------- #
def packed_order(lengths, batch):
    lengths = np.asarray(lengths)
    sorted_idx = np.argsort(-lengths, kind="stable")          # descending, stable
    max_len = int(lengths.max())
    batch_sizes = np.array([(lengths > t).sum() for t in range(max_len)], dtype=np.int32)
    flat = []
    for t in range(max_len):
        for j in range(int(batch_sizes[t])):
            flat.append(t * batch + int(sorted_idx[j]))       # index into (T*Bp, H) time-major
    unsorted_idx = np.empty_like(sorted_idx)
    unsorted_idx[sorted_idx] = np.arange(len(sorted_idx))
    return (np.array(flat, dtype=np.int32), batch_sizes,
            sorted_idx.astype(np.int32), unsorted_idx.astype(np.int32))


# --------------------------------------------------------------------------- #
# Deterministic parameter init (mirrors init_weights() shapes/rules),         #
# at LOGICAL sizes; padding to hardware tiles happens in pad_params().        #
# --------------------------------------------------------------------------- #
def xavier_uniform(key, shape):           # shape = (out, in) as in PyTorch
    fan_out, fan_in = shape
    bound = float(np.sqrt(6.0 / (fan_in + fan_out)))
    return jax.random.uniform(key, shape, jnp.float32, -bound, bound)


def xavier_normal(key, shape):
    fan_out, fan_in = shape
    std = float(np.sqrt(2.0 / (fan_in + fan_out)))
    return jax.random.normal(key, shape, jnp.float32) * std


def init_params(key, F, E, H, V):
    ks = jax.random.split(key, 10)
    V2 = V + 2
    p = {}
    p["enc_w"] = xavier_uniform(ks[0], (E, F)).T                    # (F, E)
    p["enc_b"] = jnp.zeros((1, E), jnp.float32)
    p["bn_gamma"] = jnp.ones((1, E), jnp.float32)
    p["bn_beta"] = jnp.zeros((1, E), jnp.float32)
    p["embedding"] = jax.random.uniform(ks[1], (V2, E), jnp.float32, -1.0, 1.0)
    p["wih1"] = xavier_normal(ks[2], (4 * H, E)).T                  # (E, 4H)
    p["whh1"] = xavier_normal(ks[3], (4 * H, H)).T                  # (H, 4H)
    p["b1"] = jnp.zeros((1, 4 * H), jnp.float32)                    # b_ih + b_hh
    p["wih2"] = xavier_normal(ks[4], (4 * H, H)).T
    p["whh2"] = xavier_normal(ks[5], (4 * H, H)).T
    p["b2"] = jnp.zeros((1, 4 * H), jnp.float32)
    p["out1_w"] = xavier_uniform(ks[6], (H, H)).T                   # (H, H)
    p["out1_b"] = jnp.zeros((1, H), jnp.float32)
    p["out2_w"] = xavier_uniform(ks[7], (V2, H)).T                  # (H, V2)
    p["out2_b"] = jnp.zeros((1, V2), jnp.float32)
    return p


def pad_params(p, F, E, H, V):
    """Zero-pad all params to (8,128)-friendly shapes; gate blocks padded per-gate
    so that g[:, k*Hp:(k+1)*Hp] slices stay lane-aligned and padded lanes stay zero."""
    V2 = V + 2
    Fp, Ep, Hp, V2p = (_round_up(d, 128) for d in (F, E, H, V2))

    def pad2(a, r, c):
        return jnp.pad(a, ((0, r - a.shape[0]), (0, c - a.shape[1])))

    def pad_gate_cols(w):                       # (..., 4H) -> (..., 4Hp) per-gate padding
        parts = [jnp.pad(w[:, k * H:(k + 1) * H], ((0, 0), (0, Hp - H)))
                 for k in range(4)]
        return jnp.concatenate(parts, axis=1)

    mm = MATMUL_DTYPE
    pp = {
        "enc_w": pad2(p["enc_w"], Fp, Ep).astype(mm),
        "enc_b": pad2(p["enc_b"], 1, Ep),
        "bn_gamma": pad2(p["bn_gamma"], 1, Ep),
        "bn_beta": pad2(p["bn_beta"], 1, Ep),
        "embedding": pad2(p["embedding"], V2, Ep),
        "wih1": pad2(pad_gate_cols(p["wih1"]), Ep, 4 * Hp).astype(mm),
        "whh1": pad2(pad_gate_cols(p["whh1"]), Hp, 4 * Hp).astype(mm),
        "b1": pad_gate_cols(p["b1"]),
        "wih2": pad2(pad_gate_cols(p["wih2"]), Hp, 4 * Hp).astype(mm),
        "whh2": pad2(pad_gate_cols(p["whh2"]), Hp, 4 * Hp).astype(mm),
        "b2": pad_gate_cols(p["b2"]),
        "out1_w": pad2(p["out1_w"], Hp, Hp).astype(mm),
        "out1_b": pad2(p["out1_b"], 1, Hp),
        "out2_w": pad2(p["out2_w"], Hp, V2p).astype(mm),
        "out2_b": pad2(p["out2_b"], 1, V2p),
        "_dims": dict(F=F, E=E, H=H, V2=V2, Fp=Fp, Ep=Ep, Hp=Hp, V2p=V2p),
    }
    return pp


# --------------------------------------------------------------------------- #
# TitleGenerator.forward                                                      #
# --------------------------------------------------------------------------- #
def title_generator_forward(pp, images, titles, lengths):
    d = pp["_dims"]
    Ep, Hp, V2, V2p, Fp = d["Ep"], d["Hp"], d["V2"], d["V2p"], d["Fp"]

    B = images.shape[0]
    Bp = _round_up(B, 8)

    # --- Encoder (use_images=False): flatten -> Linear -> BatchNorm (-> Dropout=id) ---
    x = images.reshape(B, -1)
    xp = jnp.pad(x, ((0, Bp - B), (0, Fp - x.shape[1])))
    lin = matmul_bias(xp, pp["enc_w"], pp["enc_b"])                         # (Bp, Ep)
    feats = batchnorm_forward(lin, pp["bn_gamma"], pp["bn_beta"], n_valid=B)

    # --- Decoder input sequence: [features ; embedded titles], time-major ---
    T = titles.shape[0]
    T1 = T + 1
    emb = jnp.take(pp["embedding"], titles, axis=0)                         # (T, B, Ep)
    emb = jnp.pad(emb, ((0, 0), (0, Bp - B), (0, 0)))
    seq = jnp.concatenate([feats[None], emb], axis=0)                       # (T1, Bp, Ep)
    # TODO(synk): Dropout(0.5) on the embeddings is stochastic in train mode; identity here.

    # --- 2-layer LSTM: hoisted input projections + per-layer recurrences ---
    gx1 = matmul_bias(seq.reshape(T1 * Bp, Ep), pp["wih1"], pp["b1"])       # (T1*Bp, 4Hp)
    h1 = lstm_layer_forward(gx1.reshape(T1, Bp, 4 * Hp), pp["whh1"], hidden=Hp)
    gx2 = matmul_bias(h1.reshape(T1 * Bp, Hp), pp["wih2"], pp["b2"])
    h2 = lstm_layer_forward(gx2.reshape(T1, Bp, 4 * Hp), pp["whh2"], hidden=Hp)

    # --- pack_padded_sequence(..., enforce_sorted=False): gather valid steps ---
    flat_idx, batch_sizes, sorted_idx, unsorted_idx = packed_order(lengths, Bp)
    packed_h = h2.reshape(T1 * Bp, Hp)[jnp.asarray(flat_idx)]               # (N, Hp)
    N = packed_h.shape[0]
    Np = _round_up(N, 8)
    packed_h = jnp.pad(packed_h, ((0, Np - N), (0, 0)))

    # --- Output head: Linear(H,H) -> ReLU -> Linear(H, V+2), tiled (rows, vocab) ---
    out_p = out_mlp_forward(packed_h, pp["out1_w"], pp["out1_b"],
                            pp["out2_w"], pp["out2_b"])                     # (Np, V2p)
    outputs = out_p[:N, :V2]

    packed_seq = (outputs, jnp.asarray(batch_sizes),
                  jnp.asarray(sorted_idx), jnp.asarray(unsorted_idx))
    return outputs, packed_seq


# --------------------------------------------------------------------------- #
if __name__ == "__main__":
    # Small synthetic shapes. The real Encoder uses resnet.fc.in_features (=2048) as F;
    # here F=32 keeps the example small (same math, shapes are padded to tiles anyway).
    B, F, E, H, V, T = 4, 32, 32, 32, 30, 8

    key = jax.random.PRNGKey(0)
    k_param, k_img, k_tit = jax.random.split(key, 3)

    params = init_params(k_param, F, E, H, V)
    pp = pad_params(params, F, E, H, V)

    images = jax.random.normal(k_img, (B, F), jnp.float32)                  # pre-flattened features
    titles = jax.random.randint(k_tit, (T, B), 0, V + 2, dtype=jnp.int32)   # time-major token ids
    lengths = [T + 1, 7, 5, 3]                                              # include prepended feature step

    outputs, packed_seq = title_generator_forward(pp, images, titles, lengths)
    jax.block_until_ready(outputs)

    assert outputs.shape == (sum(lengths), V + 2)
    assert bool(jnp.all(jnp.isfinite(outputs)))
    print("KERNEL_OK")
</pallas_src>

<mosaic_0001>
module attributes {stable_mosaic.version = 11 : i64} {
  func.func @_matmul_bias_kernel(%arg0: i32, %arg1: i32, %arg2: i32, %arg3: memref<8x128xbf16, #tpu.memory_space<vmem>>, %arg4: memref<128x128xbf16, #tpu.memory_space<vmem>>, %arg5: memref<1x128xf32, #tpu.memory_space<vmem>>, %arg6: memref<8x128xf32, #tpu.memory_space<vmem>>, %arg7: memref<8x128xf32, #tpu.memory_space<vmem>>) attributes {dimension_semantics = [#tpu.dimension_semantics<parallel>, #tpu.dimension_semantics<parallel>, #tpu.dimension_semantics<arbitrary>], iteration_bounds = array<i64: 1, 1, 1>, scalar_prefetch = 0 : i64, scratch_operands = 1 : i64, tpu.core_type = #tpu.core_type<tc>, window_params = [{transform_indices = @transform_0, window_bounds = array<i64: 8, 128>}, {transform_indices = @transform_1, window_bounds = array<i64: 128, 128>}, {transform_indices = @transform_2, window_bounds = array<i64: 1, 128>}, {transform_indices = @transform_3, window_bounds = array<i64: 8, 128>}]} {
    %c0_i32 = arith.constant 0 : i32
    %0 = arith.cmpi eq, %arg2, %c0_i32 : i32
    %1 = arith.extui %0 : i1 to i32
    %c0_i32_0 = arith.constant 0 : i32
    %2 = arith.cmpi ne, %1, %c0_i32_0 : i32
    scf.if %2 {
      %cst_10 = arith.constant 0.000000e+00 : f32
      %12 = vector.broadcast %cst_10 : f32 to vector<8x128xf32>
      %c0_11 = arith.constant 0 : index
      %c0_12 = arith.constant 0 : index
      %13 = vector.load %arg7[%c0_11, %c0_12] : memref<8x128xf32, #tpu.memory_space<vmem>>, vector<8x128xf32>
      tpu.vector_store %arg7[%c0_11, %c0_12], %12 {strides = array<i32>} : memref<8x128xf32, #tpu.memory_space<vmem>>, vector<8x128xf32>,
    } else {
    }
    %c0 = arith.constant 0 : index
    %c0_1 = arith.constant 0 : index
    %3 = vector.load %arg7[%c0, %c0_1] : memref<8x128xf32, #tpu.memory_space<vmem>>, vector<8x128xf32>
    %c0_2 = arith.constant 0 : index
    %c0_3 = arith.constant 0 : index
    %4 = vector.load %arg3[%c0_2, %c0_3] : memref<8x128xbf16, #tpu.memory_space<vmem>>, vector<8x128xbf16>
    %c0_4 = arith.constant 0 : index
    %c0_5 = arith.constant 0 : index
    %5 = vector.load %arg4[%c0_4, %c0_5] : memref<128x128xbf16, #tpu.memory_space<vmem>>, vector<128x128xbf16>
    %cst = arith.constant dense<0.000000e+00> : vector<8x128xf32>
    %6 = tpu.matmul %4, %5, %cst {dimension_numbers = #tpu.dot_dimension_numbers<[1], [0], [0], [1], [0, 0, 1, 1], [], []>} : vector<8x128xbf16>, vector<128x128xbf16>, vector<8x128xf32> -> vector<8x128xf32>
    %7 = arith.addf %3, %6 : vector<8x128xf32>
    %c0_6 = arith.constant 0 : index
    %c0_7 = arith.constant 0 : index
    %8 = vector.load %arg7[%c0_6, %c0_7] : memref<8x128xf32, #tpu.memory_space<vmem>>, vector<8x128xf32>
    tpu.vector_store %arg7[%c0_6, %c0_7], %7 {strides = array<i32>} : memref<8x128xf32, #tpu.memory_space<vmem>>, vector<8x128xf32>,
    %c0_i32_8 = arith.constant 0 : i32
    %9 = arith.cmpi eq, %arg2, %c0_i32_8 : i32
    %10 = arith.extui %9 : i1 to i32
    %c0_i32_9 = arith.constant 0 : i32
    %11 = arith.cmpi ne, %10, %c0_i32_9 : i32
    scf.if %11 {
      %c0_10 = arith.constant 0 : index
      %c0_11 = arith.constant 0 : index
      %12 = vector.load %arg7[%c0_10, %c0_11] : memref<8x128xf32, #tpu.memory_space<vmem>>, vector<8x128xf32>
      %c0_12 = arith.constant 0 : index
      %c0_13 = arith.constant 0 : index
      %13 = vector.load %arg5[%c0_12, %c0_13] : memref<1x128xf32, #tpu.memory_space<vmem>>, vector<1x128xf32>
      %14 = vector.broadcast %13 : vector<1x128xf32> to vector<8x128xf32>
      %15 = arith.addf %12, %14 : vector<8x128xf32>
      %c0_14 = arith.constant 0 : index
      %c0_15 = arith.constant 0 : index
      %16 = vector.load %arg6[%c0_14, %c0_15] : memref<8x128xf32, #tpu.memory_space<vmem>>, vector<8x128xf32>
      tpu.vector_store %arg6[%c0_14, %c0_15], %15 {strides = array<i32>} : memref<8x128xf32, #tpu.memory_space<vmem>>, vector<8x128xf32>,
    } else {
    }
    return
  }
  func.func @transform_0(%arg0: i32, %arg1: i32, %arg2: i32) -> (i32, i32) {
    %c0_i32 = arith.constant 0 : i32
    return %arg0, %arg2 : i32, i32
  }
  func.func @transform_1(%arg0: i32, %arg1: i32, %arg2: i32) -> (i32, i32) {
    %c0_i32 = arith.constant 0 : i32
    return %arg2, %arg1 : i32, i32
  }
  func.func @transform_2(%arg0: i32, %arg1: i32, %arg2: i32) -> (i32, i32) {
    %c0_i32 = arith.constant 0 : i32
    %c0_i32_0 = arith.constant 0 : i32
    return %c0_i32, %arg1 : i32, i32
  }
  func.func @transform_3(%arg0: i32, %arg1: i32, %arg2: i32) -> (i32, i32) {
    %c0_i32 = arith.constant 0 : i32
    return %arg0, %arg1 : i32, i32
  }
}

</mosaic_0001>

<llo_original>
// kernel: tpu_custom_call.1
$region0: #{tpu_custom_call.1}
  #allocation0 [shape = 'u32[]', space=smem, size = 0x4, offset = 0x4, fixed_abs, tag = 'smem constant byte address 0x4 - core index']
  #allocation1 [shape = 'u32[144,128]{1,0:T(1,128)}', space=vmem, size = 0x12000, scoped, tag = 'internal scratch']
  #allocation2 [shape = 'f32[8,128]{1,0:T(8,128)}', space=vmem, size = 0x1000, scoped, tag = 'scratch operand']
  %s0 = inlined_call_operand.hbm [shape: bf16[8,128], index: 0, kind: input, shape index: {}]
  %s1 = inlined_call_operand.hbm [shape: bf16[128,128], index: 1, kind: input, shape index: {}]
  %s2 = inlined_call_operand.vmem [shape: f32[1,128], index: 2, kind: input, shape index: {}]
  %s3 = inlined_call_operand.hbm [shape: f32[8,128], index: 3, kind: output, shape index: {}]
  %s4 = sld [smem:[#allocation0]]
  $region38: #{tpu_custom_call.1} parent=0
    _
  %s6 = ssub.s32 1, %s4
  %s7 = scalar_select 0, %s6, %s4
  $region1: #{tpu_custom_call.1} parent=0
    #allocation3 [shape = 'u8[2048]{0}', space=vmem, size = 0x800, scoped, tag = 'input window, operand 0, single buffered']
    #allocation4 [shape = 's32[1]{0}', space=sflag, size = 0x4, scoped, tag = 'scoped memory for tpu_custom_call.1']
    #allocation5 [shape = 's32[1]{0}', space=sflag, size = 0x4, scoped, tag = 'scoped memory for tpu_custom_call.1']
    #allocation6 [shape = 'u8[32768]{0}', space=vmem, size = 0x8000, scoped, tag = 'input window, operand 1, single buffered']
    #allocation7 [shape = 's32[1]{0}', space=sflag, size = 0x4, scoped, tag = 'scoped memory for tpu_custom_call.1']
    #allocation8 [shape = 'u8[4096]{0}', space=vmem, size = 0x1000, scoped, tag = 'output window, operand 0, single buffered']
    %8 = vsyncpa [#allocation4], 0
    %9 = vsyncpa [#allocation7], 0
    %10 = vsyncpa [#allocation5], 0
    // Predicated region
    $region2: #{tpu_custom_call.1} parent=1 // pred_check
      _
    $region3: #{tpu_custom_call.1} parent=1 // pred_check_branch
      %12 = sbr.rel (0) target = $region5
    $region4: #{tpu_custom_call.1} parent=1 // pred_region
      %s14 = ssub.s32 64, 64
      %15 = vsyncadd [#allocation4], %s14
      %s17 = sshll.u32 [#allocation3], 4
      %s18 = int_to_ptr.vmem [resolvable:$true] %s17
      %20 = dma.hbm_to_vmem [thread:$0]  %s0, 64, %s18, [#allocation4]
    $region5: #{tpu_custom_call.1} parent=1 // pred_fallthru
      _
    // Predicated region
    $region6: #{tpu_custom_call.1} parent=1 // pred_check
      _
    $region7: #{tpu_custom_call.1} parent=1 // pred_check_branch
      %22 = sbr.rel (0) target = $region9
    $region8: #{tpu_custom_call.1} parent=1 // pred_region
      %s24 = ssub.s32 1024, 1024
      %25 = vsyncadd [#allocation7], %s24
      %s26 = sshll.u32 [#allocation6], 4
      %s27 = int_to_ptr.vmem [resolvable:$true] %s26
      %32 = dma.hbm_to_vmem [thread:$0]  %s1, 1024, %s27, [#allocation7], 64, 64, 4
    $region9: #{tpu_custom_call.1} parent=1 // pred_fallthru
      _
    // Predicated region
    $region10: #{tpu_custom_call.1} parent=1 // pred_check
      _
    $region11: #{tpu_custom_call.1} parent=1 // pred_check_branch
      %34 = sbr.rel (0) target = $region13
    $region12: #{tpu_custom_call.1} parent=1 // pred_region
      _
    $region13: #{tpu_custom_call.1} parent=1 // pred_fallthru
      _
    // Predicated region
    $region14: #{tpu_custom_call.1} parent=1 // pred_check
      _
    $region15: #{tpu_custom_call.1} parent=1 // pred_check_branch
      %36 = sbr.rel (0) target = $region17
    $region16: #{tpu_custom_call.1} parent=1 // pred_region
      %37 = dma.done [#allocation4], 64
    $region17: #{tpu_custom_call.1} parent=1 // pred_fallthru
      _
    // Predicated region
    $region18: #{tpu_custom_call.1} parent=1 // pred_check
      _
    $region19: #{tpu_custom_call.1} parent=1 // pred_check_branch
      %39 = sbr.rel (0) target = $region21
    $region20: #{tpu_custom_call.1} parent=1 // pred_region
      %40 = dma.done [#allocation7], 1024
    $region21: #{tpu_custom_call.1} parent=1 // pred_fallthru
      _
    %p42 = scmp.eq.s32.totalorder 0, 0
    // Predicated region
    $region22: #{tpu_custom_call.1} parent=1 // pred_check
      %p43 = pneg %p42
    $region23: #{tpu_custom_call.1} parent=1 // pred_check_branch
      %45 = sbr.rel (%p43) target = $region25
    $region24: #{tpu_custom_call.1} parent=1 // pred_region
      %46 = vst [vmem:[#allocation2] sm:$0xff] 0.0
    $region25: #{tpu_custom_call.1} parent=1 // pred_fallthru
      _
    %v47 = vld [vmem:[#allocation2] sm:$0xff]
    %v48 = vld [vmem:[#allocation3] sm:$0xf]
    %v49 = vld [vmem:[#allocation6] sm:$0xf]
    %v50 = vld [vmem:[#allocation6 + $0x4] sm:$0xf]
    %v51 = vld [vmem:[#allocation6 + $0x8] sm:$0xf]
    %v52 = vld [vmem:[#allocation6 + $0xc] sm:$0xf]
    %v53 = vld [vmem:[#allocation6 + $0x10] sm:$0xf]
    %v54 = vld [vmem:[#allocation6 + $0x14] sm:$0xf]
    %v55 = vld [vmem:[#allocation6 + $0x18] sm:$0xf]
    %v56 = vld [vmem:[#allocation6 + $0x1c] sm:$0xf]
    %v57 = vld [vmem:[#allocation6 + $0x20] sm:$0xf]
    %v58 = vld [vmem:[#allocation6 + $0x24] sm:$0xf]
    %v59 = vld [vmem:[#allocation6 + $0x28] sm:$0xf]
    %v60 = vld [vmem:[#allocation6 + $0x2c] sm:$0xf]
    %v61 = vld [vmem:[#allocation6 + $0x30] sm:$0xf]
    %v62 = vld [vmem:[#allocation6 + $0x34] sm:$0xf]
    %v63 = vld [vmem:[#allocation6 + $0x38] sm:$0xf]
    %v64 = vld [vmem:[#allocation6 + $0x3c] sm:$0xf]
    %v81 = vunpack.c.l.b16 %v49
    %v82 = vunpack.c.l.b16 %v50
    %v83 = vunpack.c.l.b16 %v51
    %v84 = vunpack.c.l.b16 %v52
    %v85 = vunpack.c.l.b16 %v53
    %v86 = vunpack.c.l.b16 %v54
    %v87 = vunpack.c.l.b16 %v55
    %v88 = vunpack.c.l.b16 %v56
    %v89 = vunpack.c.l.b16 %v57
    %v90 = vunpack.c.l.b16 %v58
    %v91 = vunpack.c.l.b16 %v59
    %v92 = vunpack.c.l.b16 %v60
    %v93 = vunpack.c.l.b16 %v61
    %v94 = vunpack.c.l.b16 %v62
    %v95 = vunpack.c.l.b16 %v63
    %v96 = vunpack.c.l.b16 %v64
    %v97 = vpack.c.b16 %v82, %v81
    %v98 = vpack.c.b16 %v84, %v83
    %v99 = vpack.c.b16 %v86, %v85
    %v100 = vpack.c.b16 %v88, %v87
    %v101 = vpack.c.b16 %v90, %v89
    %v102 = vpack.c.b16 %v92, %v91
    %v103 = vpack.c.b16 %v94, %v93
    %v104 = vpack.c.b16 %v96, %v95
    %113 = vmatprep.subr.bf16.mxu0 0
    %114 = vmatpush1.bf16.msra.mxu0 %v97
    %115 = vmatprep.subr.bf16.mxu0 0
    %116 = vmatpush1.bf16.msra.mxu0 %v98
    %117 = vmatprep.subr.bf16.mxu0 0
    %118 = vmatpush1.bf16.msra.mxu0 %v99
    %119 = vmatprep.subr.bf16.mxu0 0
    %120 = vmatpush1.bf16.msra.mxu0 %v100
    %121 = vmatprep.subr.bf16.mxu0 0
    %122 = vmatpush1.bf16.msra.mxu0 %v101
    %123 = vmatprep.subr.bf16.mxu0 0
    %124 = vmatpush1.bf16.msra.mxu0 %v102
    %125 = vmatprep.subr.bf16.mxu0 0
    %126 = vmatpush1.bf16.msra.mxu0 %v103
    %127 = vmatprep.subr.bf16.mxu0 0
    %128 = vmatpush1.bf16.msra.mxu0 %v104
    %129 = vmatprep.subr.bf16.mxu0 0
    %130 = vmatpush1.bf16.msra.mxu0 0
    %131 = vmatprep.subr.bf16.mxu0 0
    %132 = vmatpush1.bf16.msra.mxu0 0
    %133 = vmatprep.subr.bf16.mxu0 0
    %134 = vmatpush1.bf16.msra.mxu0 0
    %135 = vmatprep.subr.bf16.mxu0 0
    %136 = vmatpush1.bf16.msra.mxu0 0
    %137 = vmatprep.subr.bf16.mxu0 0
    %138 = vmatpush1.bf16.msra.mxu0 0
    %139 = vmatprep.subr.bf16.mxu0 0
    %140 = vmatpush1.bf16.msra.mxu0 0
    %141 = vmatprep.subr.bf16.mxu0 0
    %142 = vmatpush1.bf16.msra.mxu0 0
    %143 = vmatprep.subr.bf16.mxu0 0
    %144 = vmatpush1.bf16.msra.mxu0 0
    %145 = vmatprep.mubr.bf16.mxu0 0
    %146 = vmatmul.mubr.bf16.gmra.mrb[0].mxu0 %v48
    %v147 = vpop.f32.mrb[0].mxu0
    %v148 = vadd.f32 0.0, %v147
    %v149 = vpop.f32.mrb[0].mxu0
    %v150 = vpop.f32.mrb[0].mxu0
    %v151 = vpop.f32.mrb[0].mxu0
    %152 = vdwg.mxu0
    %v153 = vadd.f32 %v47, %v148
    %154 = vst [vmem:[#allocation2] sm:$0xff] %v153
    // Predicated region
    $region26: #{tpu_custom_call.1} parent=1 // pred_check
      %p155 = pneg %p42
    $region27: #{tpu_custom_call.1} parent=1 // pred_check_branch
      %157 = sbr.rel (%p155) target = $region29
    $region28: #{tpu_custom_call.1} parent=1 // pred_region
      %v158 = vld [vmem:[#allocation2] sm:$0xff]
      %v159 = vld [vmem:[%s2] sm:$0x1]
      %v161 = vlaneseq
      %v162 = vshrl.u32 %v161, 7
      %v163 = vsub.s32 0, %v162
      %v164 = vrot.slane %v159, %v163
      %v166 = vadd.f32 %v158, %v164
      %167 = vst [vmem:[#allocation8] sm:$0xff] %v166
    $region29: #{tpu_custom_call.1} parent=1 // pred_fallthru
      _
    // Predicated region
    $region30: #{tpu_custom_call.1} parent=1 // pred_check
      _
    $region31: #{tpu_custom_call.1} parent=1 // pred_check_branch
      %169 = sbr.rel (0) target = $region33
    $region32: #{tpu_custom_call.1} parent=1 // pred_region
      %s171 = ssub.s32 128, 128
      %172 = vsyncadd [#allocation5], %s171
      %s174 = sshll.u32 [#allocation8], 4
      %s175 = int_to_ptr.vmem [resolvable:$true] %s174
      %177 = dma.vmem_to_hbm [thread:$0]  %s175, 128, %s3, [#allocation5]
    $region33: #{tpu_custom_call.1} parent=1 // pred_fallthru
      _
    // Predicated region
    $region34: #{tpu_custom_call.1} parent=1 // pred_check
      _
    $region35: #{tpu_custom_call.1} parent=1 // pred_check_branch
      %179 = sbr.rel (0) target = $region37
    $region36: #{tpu_custom_call.1} parent=1 // pred_region
      %180 = dma.done [#allocation5], 128
    $region37: #{tpu_custom_call.1} parent=1 // pred_fallthru
      _
    %181 = vsyncpa [#allocation4], 1
    %182 = vsyncpa [#allocation7], 1
    %183 = vsyncpa [#allocation5], 1

</llo_original>
